<compile_context>
chip_gen: v6e
topology: v6e:2x2x1
jax: 0.10.0
libtpu: 0.0.40
codegen_flags: <defaults>
</compile_context>

<pallas_src>
import numpy as np
import jax
import jax.numpy as jnp
from jax import lax
from jax.experimental import pallas as pl
from jax.experimental.pallas import tpu as pltpu


# ---------------------------------------------------------------------------
# Host-side parameter parsing (mirrors _parse_conv_params, keeping only the
# 5 nonzero taps per input plane: top, bottom, left, right, center).
# The 1/C of the channel-mean is folded into the avg-plane taps here.
# ---------------------------------------------------------------------------
def parse_taps(spatial_att_weights, C):
    B = spatial_att_weights.shape[0]
    p = spatial_att_weights[:, :8].reshape(B, 2, 4).astype(jnp.float32)
    center = -jnp.sum(p, axis=2, keepdims=True)             # [B, 2, 1]
    taps = jnp.concatenate([p, center], axis=2)              # [B, 2, 5]
    # plane 0 (avg) gets the 1/C mean scale folded in; plane 1 (max) unchanged.
    scale = jnp.array([1.0 / C, 1.0], jnp.float32).reshape(1, 2, 1)
    taps = taps * scale
    return taps.reshape(B * 10)                               # flat 1D for SMEM


# ---------------------------------------------------------------------------
# Pallas kernel: one sample per grid step.
# ---------------------------------------------------------------------------
def spatial_modulation_kernel(taps_ref, x_ref, o_ref):
    b = pl.program_id(0)
    C, H, W = x_ref.shape                      # batch dim squeezed by BlockSpec

    # ---- Channel pooling, streamed per channel (bounded vreg live ranges). --
    x0 = x_ref[0].astype(jnp.float32)

    def pool_body(c, carry):
        s, m = carry
        xc = x_ref[c].astype(jnp.float32)
        return s + xc, jnp.maximum(m, xc)

    csum, cmax = lax.fori_loop(1, C, pool_body, (x0, x0), unroll=True)
    # Note: mean's 1/C is already folded into taps for the csum plane.

    # ---- Hoisted boundary masks for the zero-padded 5-point stencil. -------
    row = lax.broadcasted_iota(jnp.int32, (H, W), 0)
    col = lax.broadcasted_iota(jnp.int32, (H, W), 1)
    has_top = row > 0
    has_bot = row < H - 1
    has_left = col > 0
    has_right = col < W - 1
    zero = jnp.zeros((), jnp.float32)

    # ---- 5-point stencil on the VPU; shifts via pltpu.roll (XLU slot). -----
    base = b * 10
    y3 = jnp.zeros((H, W), jnp.float32)
    for ci, plane in enumerate((csum, cmax)):
        t = base + 5 * ci
        y3 = y3 + taps_ref[t + 0] * jnp.where(has_top, pltpu.roll(plane, 1, 0), zero)
        y3 = y3 + taps_ref[t + 1] * jnp.where(has_bot, pltpu.roll(plane, H - 1, 0), zero)
        y3 = y3 + taps_ref[t + 2] * jnp.where(has_left, pltpu.roll(plane, 1, 1), zero)
        y3 = y3 + taps_ref[t + 3] * jnp.where(has_right, pltpu.roll(plane, W - 1, 1), zero)
        y3 = y3 + taps_ref[t + 4] * plane

    # ---- sigmoid (EUP exp + approx EUP reciprocal) and fused residual. -----
    gate = pl.reciprocal(1.0 + jnp.exp(-y3), approx=True)    # sigmoid(y3)
    g1 = 1.0 + gate                                          # out = x * (1 + gate)

    # ---- Apply + store, streamed per channel. -------------------------------
    def write_body(c, carry):
        o_ref[c] = (x_ref[c].astype(jnp.float32) * g1).astype(o_ref.dtype)
        return carry

    lax.fori_loop(0, C, write_body, 0, unroll=True)


# ---------------------------------------------------------------------------
# Wrapper
# ---------------------------------------------------------------------------
def spatial_modulation(x, spatial_att_weights):
    B, C, H, W = x.shape
    taps = parse_taps(spatial_att_weights, C)                 # [B*10] f32

    return pl.pallas_call(
        spatial_modulation_kernel,
        out_shape=jax.ShapeDtypeStruct((B, C, H, W), x.dtype),
        grid=(B,),
        in_specs=[
            # Flat tap table in SMEM (tiny, scalar reads per sample).
            pl.BlockSpec(memory_space=pltpu.MemorySpace.SMEM),
            # One full sample per grid step; batch dim squeezed out.
            pl.BlockSpec((None, C, H, W), lambda b: (b, 0, 0, 0)),
        ],
        out_specs=pl.BlockSpec((None, C, H, W), lambda b: (b, 0, 0, 0)),
        compiler_params=pltpu.CompilerParams(
            dimension_semantics=("parallel",)),
    )(taps, x)


# ---------------------------------------------------------------------------
# Pure-JAX reference (mirrors the PyTorch code with a real grouped conv).
# ---------------------------------------------------------------------------
def reference_spatial_modulation(x, spatial_att_weights):
    B, C, H, W = x.shape
    avg = jnp.mean(x, axis=1, keepdims=True)
    mx = jnp.max(x, axis=1, keepdims=True)
    y = jnp.concatenate([avg, mx], axis=1)                    # [B, 2, H, W]

    p = spatial_att_weights[:, :8].reshape(B, 2, 4)
    k = jnp.zeros((B, 2, 3, 3), x.dtype)
    k = k.at[:, :, 0, 1].set(p[:, :, 0])
    k = k.at[:, :, 2, 1].set(p[:, :, 1])
    k = k.at[:, :, 1, 0].set(p[:, :, 2])
    k = k.at[:, :, 1, 2].set(p[:, :, 3])
    k = k.at[:, :, 1, 1].set(-jnp.sum(p, axis=2))

    y_group = y.reshape(1, B * 2, H, W)
    w = k.reshape(B, 2, 3, 3)                                 # [O=B, I/g=2, 3, 3]
    y3 = lax.conv_general_dilated(
        y_group, w, window_strides=(1, 1), padding="SAME",
        dimension_numbers=("NCHW", "OIHW", "NCHW"),
        feature_group_count=B)
    y3 = y3.reshape(B, 1, H, W)
    return x * jax.nn.sigmoid(y3) + x


# ---------------------------------------------------------------------------
# Example run
# ---------------------------------------------------------------------------
if __name__ == "__main__":
    # Small shapes; W=128 keeps all vector loads/stores lane-dense.
    B, C, H, W = 2, 4, 16, 128

    key = jax.random.PRNGKey(0)
    kx, ka = jax.random.split(key)
    x = jax.random.normal(kx, (B, C, H, W), jnp.float32)
    spatial_att_weights = 0.5 * jax.random.normal(ka, (B, 16), jnp.float32)

    out = spatial_modulation(x, spatial_att_weights)
    out = jax.block_until_ready(out)

    ref = reference_spatial_modulation(x, spatial_att_weights)
    # Tolerance accounts for the approx-reciprocal sigmoid (~1e-3 rel).
    np.testing.assert_allclose(np.asarray(out), np.asarray(ref),
                               rtol=2e-3, atol=2e-3)

    print("KERNEL_OK")
</pallas_src>

<mosaic_0001>
module attributes {stable_mosaic.version = 11 : i64} {
  func.func @spatial_modulation_kernel(%arg0: i32, %arg1: memref<20xf32, #tpu.memory_space<smem>>, %arg2: memref<1x4x16x128xf32, #tpu.memory_space<vmem>>, %arg3: memref<1x4x16x128xf32, #tpu.memory_space<vmem>>) attributes {dimension_semantics = [#tpu.dimension_semantics<parallel>], iteration_bounds = array<i64: 2>, scalar_prefetch = 0 : i64, scratch_operands = 0 : i64, tpu.core_type = #tpu.core_type<tc>, window_params = [{transform_indices = @transform_0, window_bounds = array<i64: 20>}, {transform_indices = @transform_1, window_bounds = array<i64: 1, 4, 16, 128>}, {transform_indices = @transform_2, window_bounds = array<i64: 1, 4, 16, 128>}]} {
    %c0 = arith.constant 0 : index
    %c0_0 = arith.constant 0 : index
    %c0_1 = arith.constant 0 : index
    %c0_2 = arith.constant 0 : index
    %0 = vector.load %arg2[%c0, %c0_0, %c0_1, %c0_2] : memref<1x4x16x128xf32, #tpu.memory_space<vmem>>, vector<1x1x16x128xf32>
    %1 = vector.shape_cast %0 : vector<1x1x16x128xf32> to vector<16x128xf32>
    %c1_i32 = arith.constant 1 : i32
    %c0_3 = arith.constant 0 : index
    %2 = arith.index_cast %c1_i32 : i32 to index
    %c0_4 = arith.constant 0 : index
    %c0_5 = arith.constant 0 : index
    %3 = vector.load %arg2[%c0_3, %2, %c0_4, %c0_5] : memref<1x4x16x128xf32, #tpu.memory_space<vmem>>, vector<1x1x16x128xf32>
    %4 = vector.shape_cast %3 : vector<1x1x16x128xf32> to vector<16x128xf32>
    %5 = arith.addf %1, %4 : vector<16x128xf32>
    %6 = arith.maximumf %1, %4 : vector<16x128xf32>
    %c2_i32 = arith.constant 2 : i32
    %c0_6 = arith.constant 0 : index
    %7 = arith.index_cast %c2_i32 : i32 to index
    %c0_7 = arith.constant 0 : index
    %c0_8 = arith.constant 0 : index
    %8 = vector.load %arg2[%c0_6, %7, %c0_7, %c0_8] : memref<1x4x16x128xf32, #tpu.memory_space<vmem>>, vector<1x1x16x128xf32>
    %9 = vector.shape_cast %8 : vector<1x1x16x128xf32> to vector<16x128xf32>
    %10 = arith.addf %5, %9 : vector<16x128xf32>
    %11 = arith.maximumf %6, %9 : vector<16x128xf32>
    %c3_i32 = arith.constant 3 : i32
    %c0_9 = arith.constant 0 : index
    %12 = arith.index_cast %c3_i32 : i32 to index
    %c0_10 = arith.constant 0 : index
    %c0_11 = arith.constant 0 : index
    %13 = vector.load %arg2[%c0_9, %12, %c0_10, %c0_11] : memref<1x4x16x128xf32, #tpu.memory_space<vmem>>, vector<1x1x16x128xf32>
    %14 = vector.shape_cast %13 : vector<1x1x16x128xf32> to vector<16x128xf32>
    %15 = arith.addf %10, %14 : vector<16x128xf32>
    %16 = arith.maximumf %11, %14 : vector<16x128xf32>
    %c3_i32_12 = arith.constant 3 : i32
    %17 = tpu.iota {dimensions = array<i32: 0>} : vector<16x128xi32>
    %18 = tpu.iota {dimensions = array<i32: 1>} : vector<16x128xi32>
    %c0_i32 = arith.constant 0 : i32
    %19 = vector.broadcast %c0_i32 : i32 to vector<16x128xi32>
    %20 = arith.cmpi sgt, %17, %19 : vector<16x128xi32>
    %c15_i32 = arith.constant 15 : i32
    %21 = vector.broadcast %c15_i32 : i32 to vector<16x128xi32>
    %22 = arith.cmpi slt, %17, %21 : vector<16x128xi32>
    %c0_i32_13 = arith.constant 0 : i32
    %23 = vector.broadcast %c0_i32_13 : i32 to vector<16x128xi32>
    %24 = arith.cmpi sgt, %18, %23 : vector<16x128xi32>
    %c127_i32 = arith.constant 127 : i32
    %25 = vector.broadcast %c127_i32 : i32 to vector<16x128xi32>
    %26 = arith.cmpi slt, %18, %25 : vector<16x128xi32>
    %c10_i32 = arith.constant 10 : i32
    %27 = arith.muli %arg0, %c10_i32 : i32
    %cst = arith.constant 0.000000e+00 : f32
    %28 = vector.broadcast %cst : f32 to vector<16x128xf32>
    %c0_i32_14 = arith.constant 0 : i32
    %29 = arith.addi %27, %c0_i32_14 : i32
    %c0_i32_15 = arith.constant 0 : i32
    %30 = arith.addi %29, %c0_i32_15 : i32
    %31 = arith.index_cast %30 : i32 to index
    %32 = memref.load %arg1[%31] : memref<20xf32, #tpu.memory_space<smem>>
    %c1_i32_16 = arith.constant 1 : i32
    %33 = tpu.dynamic_rotate %15 by %c1_i32_16 dim 0 : vector<16x128xf32>, i32 -> vector<16x128xf32>
    %cst_17 = arith.constant 0.000000e+00 : f32
    %34 = vector.broadcast %cst_17 : f32 to vector<16x128xf32>
    %35 = arith.select %20, %33, %34 : vector<16x128xi1>, vector<16x128xf32>
    %36 = vector.broadcast %32 : f32 to vector<16x128xf32>
    %37 = arith.mulf %36, %35 : vector<16x128xf32>
    %38 = arith.addf %28, %37 : vector<16x128xf32>
    %c1_i32_18 = arith.constant 1 : i32
    %39 = arith.addi %29, %c1_i32_18 : i32
    %40 = arith.index_cast %39 : i32 to index
    %41 = memref.load %arg1[%40] : memref<20xf32, #tpu.memory_space<smem>>
    %c15_i32_19 = arith.constant 15 : i32
    %42 = tpu.dynamic_rotate %15 by %c15_i32_19 dim 0 : vector<16x128xf32>, i32 -> vector<16x128xf32>
    %cst_20 = arith.constant 0.000000e+00 : f32
    %43 = vector.broadcast %cst_20 : f32 to vector<16x128xf32>
    %44 = arith.select %22, %42, %43 : vector<16x128xi1>, vector<16x128xf32>
    %45 = vector.broadcast %41 : f32 to vector<16x128xf32>
    %46 = arith.mulf %45, %44 : vector<16x128xf32>
    %47 = arith.addf %38, %46 : vector<16x128xf32>
    %c2_i32_21 = arith.constant 2 : i32
    %48 = arith.addi %29, %c2_i32_21 : i32
    %49 = arith.index_cast %48 : i32 to index
    %50 = memref.load %arg1[%49] : memref<20xf32, #tpu.memory_space<smem>>
    %c1_i32_22 = arith.constant 1 : i32
    %51 = tpu.dynamic_rotate %15 by %c1_i32_22 dim 1 : vector<16x128xf32>, i32 -> vector<16x128xf32>
    %cst_23 = arith.constant 0.000000e+00 : f32
    %52 = vector.broadcast %cst_23 : f32 to vector<16x128xf32>
    %53 = arith.select %24, %51, %52 : vector<16x128xi1>, vector<16x128xf32>
    %54 = vector.broadcast %50 : f32 to vector<16x128xf32>
    %55 = arith.mulf %54, %53 : vector<16x128xf32>
    %56 = arith.addf %47, %55 : vector<16x128xf32>
    %c3_i32_24 = arith.constant 3 : i32
    %57 = arith.addi %29, %c3_i32_24 : i32
    %58 = arith.index_cast %57 : i32 to index
    %59 = memref.load %arg1[%58] : memref<20xf32, #tpu.memory_space<smem>>
    %c127_i32_25 = arith.constant 127 : i32
    %60 = tpu.dynamic_rotate %15 by %c127_i32_25 dim 1 : vector<16x128xf32>, i32 -> vector<16x128xf32>
    %cst_26 = arith.constant 0.000000e+00 : f32
    %61 = vector.broadcast %cst_26 : f32 to vector<16x128xf32>
    %62 = arith.select %26, %60, %61 : vector<16x128xi1>, vector<16x128xf32>
    %63 = vector.broadcast %59 : f32 to vector<16x128xf32>
    %64 = arith.mulf %63, %62 : vector<16x128xf32>
    %65 = arith.addf %56, %64 : vector<16x128xf32>
    %c4_i32 = arith.constant 4 : i32
    %66 = arith.addi %29, %c4_i32 : i32
    %67 = arith.index_cast %66 : i32 to index
    %68 = memref.load %arg1[%67] : memref<20xf32, #tpu.memory_space<smem>>
    %69 = vector.broadcast %68 : f32 to vector<16x128xf32>
    %70 = arith.mulf %69, %15 : vector<16x128xf32>
    %71 = arith.addf %65, %70 : vector<16x128xf32>
    %c5_i32 = arith.constant 5 : i32
    %72 = arith.addi %27, %c5_i32 : i32
    %c0_i32_27 = arith.constant 0 : i32
    %73 = arith.addi %72, %c0_i32_27 : i32
    %74 = arith.index_cast %73 : i32 to index
    %75 = memref.load %arg1[%74] : memref<20xf32, #tpu.memory_space<smem>>
    %c1_i32_28 = arith.constant 1 : i32
    %76 = tpu.dynamic_rotate %16 by %c1_i32_28 dim 0 : vector<16x128xf32>, i32 -> vector<16x128xf32>
    %cst_29 = arith.constant 0.000000e+00 : f32
    %77 = vector.broadcast %cst_29 : f32 to vector<16x128xf32>
    %78 = arith.select %20, %76, %77 : vector<16x128xi1>, vector<16x128xf32>
    %79 = vector.broadcast %75 : f32 to vector<16x128xf32>
    %80 = arith.mulf %79, %78 : vector<16x128xf32>
    %81 = arith.addf %71, %80 : vector<16x128xf32>
    %c1_i32_30 = arith.constant 1 : i32
    %82 = arith.addi %72, %c1_i32_30 : i32
    %83 = arith.index_cast %82 : i32 to index
    %84 = memref.load %arg1[%83] : memref<20xf32, #tpu.memory_space<smem>>
    %c15_i32_31 = arith.constant 15 : i32
    %85 = tpu.dynamic_rotate %16 by %c15_i32_31 dim 0 : vector<16x128xf32>, i32 -> vector<16x128xf32>
    %cst_32 = arith.constant 0.000000e+00 : f32
    %86 = vector.broadcast %cst_32 : f32 to vector<16x128xf32>
    %87 = arith.select %22, %85, %86 : vector<16x128xi1>, vector<16x128xf32>
    %88 = vector.broadcast %84 : f32 to vector<16x128xf32>
    %89 = arith.mulf %88, %87 : vector<16x128xf32>
    %90 = arith.addf %81, %89 : vector<16x128xf32>
    %c2_i32_33 = arith.constant 2 : i32
    %91 = arith.addi %72, %c2_i32_33 : i32
    %92 = arith.index_cast %91 : i32 to index
    %93 = memref.load %arg1[%92] : memref<20xf32, #tpu.memory_space<smem>>
    %c1_i32_34 = arith.constant 1 : i32
    %94 = tpu.dynamic_rotate %16 by %c1_i32_34 dim 1 : vector<16x128xf32>, i32 -> vector<16x128xf32>
    %cst_35 = arith.constant 0.000000e+00 : f32
    %95 = vector.broadcast %cst_35 : f32 to vector<16x128xf32>
    %96 = arith.select %24, %94, %95 : vector<16x128xi1>, vector<16x128xf32>
    %97 = vector.broadcast %93 : f32 to vector<16x128xf32>
    %98 = arith.mulf %97, %96 : vector<16x128xf32>
    %99 = arith.addf %90, %98 : vector<16x128xf32>
    %c3_i32_36 = arith.constant 3 : i32
    %100 = arith.addi %72, %c3_i32_36 : i32
    %101 = arith.index_cast %100 : i32 to index
    %102 = memref.load %arg1[%101] : memref<20xf32, #tpu.memory_space<smem>>
    %c127_i32_37 = arith.constant 127 : i32
    %103 = tpu.dynamic_rotate %16 by %c127_i32_37 dim 1 : vector<16x128xf32>, i32 -> vector<16x128xf32>
    %cst_38 = arith.constant 0.000000e+00 : f32
    %104 = vector.broadcast %cst_38 : f32 to vector<16x128xf32>
    %105 = arith.select %26, %103, %104 : vector<16x128xi1>, vector<16x128xf32>
    %106 = vector.broadcast %102 : f32 to vector<16x128xf32>
    %107 = arith.mulf %106, %105 : vector<16x128xf32>
    %108 = arith.addf %99, %107 : vector<16x128xf32>
    %c4_i32_39 = arith.constant 4 : i32
    %109 = arith.addi %72, %c4_i32_39 : i32
    %110 = arith.index_cast %109 : i32 to index
    %111 = memref.load %arg1[%110] : memref<20xf32, #tpu.memory_space<smem>>
    %112 = vector.broadcast %111 : f32 to vector<16x128xf32>
    %113 = arith.mulf %112, %16 : vector<16x128xf32>
    %114 = arith.addf %108, %113 : vector<16x128xf32>
    %cst_40 = arith.constant 0.000000e+00 : f32
    %115 = vector.broadcast %cst_40 : f32 to vector<16x128xf32>
    %116 = arith.subf %115, %114 : vector<16x128xf32>
    %117 = math.exp %116 : vector<16x128xf32>
    %cst_41 = arith.constant 1.000000e+00 : f32
    %118 = vector.broadcast %cst_41 : f32 to vector<16x128xf32>
    %119 = arith.addf %118, %117 : vector<16x128xf32>
    %120 = tpu.reciprocal %119 {approx = true} : vector<16x128xf32> -> vector<16x128xf32>
    %cst_42 = arith.constant 1.000000e+00 : f32
    %121 = vector.broadcast %cst_42 : f32 to vector<16x128xf32>
    %122 = arith.addf %121, %120 : vector<16x128xf32>
    %c0_i32_43 = arith.constant 0 : i32
    %c0_44 = arith.constant 0 : index
    %123 = arith.index_cast %c0_i32_43 : i32 to index
    %c0_45 = arith.constant 0 : index
    %c0_46 = arith.constant 0 : index
    %124 = vector.load %arg2[%c0_44, %123, %c0_45, %c0_46] : memref<1x4x16x128xf32, #tpu.memory_space<vmem>>, vector<1x1x16x128xf32>
    %125 = vector.shape_cast %124 : vector<1x1x16x128xf32> to vector<16x128xf32>
    %126 = arith.mulf %125, %122 : vector<16x128xf32>
    %c0_47 = arith.constant 0 : index
    %127 = arith.index_cast %c0_i32_43 : i32 to index
    %c0_48 = arith.constant 0 : index
    %c0_49 = arith.constant 0 : index
    %128 = vector.load %arg3[%c0_47, %127, %c0_48, %c0_49] : memref<1x4x16x128xf32, #tpu.memory_space<vmem>>, vector<1x1x16x128xf32>
    %129 = vector.shape_cast %128 : vector<1x1x16x128xf32> to vector<16x128xf32>
    %130 = vector.shape_cast %126 : vector<16x128xf32> to vector<1x1x16x128xf32>
    tpu.vector_store %arg3[%c0_47, %127, %c0_48, %c0_49], %130 {strides = array<i32>} : memref<1x4x16x128xf32, #tpu.memory_space<vmem>>, vector<1x1x16x128xf32>,
    %c1_i32_50 = arith.constant 1 : i32
    %c0_51 = arith.constant 0 : index
    %131 = arith.index_cast %c1_i32_50 : i32 to index
    %c0_52 = arith.constant 0 : index
    %c0_53 = arith.constant 0 : index
    %132 = vector.load %arg2[%c0_51, %131, %c0_52, %c0_53] : memref<1x4x16x128xf32, #tpu.memory_space<vmem>>, vector<1x1x16x128xf32>
    %133 = vector.shape_cast %132 : vector<1x1x16x128xf32> to vector<16x128xf32>
    %134 = arith.mulf %133, %122 : vector<16x128xf32>
    %c0_54 = arith.constant 0 : index
    %135 = arith.index_cast %c1_i32_50 : i32 to index
    %c0_55 = arith.constant 0 : index
    %c0_56 = arith.constant 0 : index
    %136 = vector.load %arg3[%c0_54, %135, %c0_55, %c0_56] : memref<1x4x16x128xf32, #tpu.memory_space<vmem>>, vector<1x1x16x128xf32>
    %137 = vector.shape_cast %136 : vector<1x1x16x128xf32> to vector<16x128xf32>
    %138 = vector.shape_cast %134 : vector<16x128xf32> to vector<1x1x16x128xf32>
    tpu.vector_store %arg3[%c0_54, %135, %c0_55, %c0_56], %138 {strides = array<i32>} : memref<1x4x16x128xf32, #tpu.memory_space<vmem>>, vector<1x1x16x128xf32>,
    %c2_i32_57 = arith.constant 2 : i32
    %c0_58 = arith.constant 0 : index
    %139 = arith.index_cast %c2_i32_57 : i32 to index
    %c0_59 = arith.constant 0 : index
    %c0_60 = arith.constant 0 : index
    %140 = vector.load %arg2[%c0_58, %139, %c0_59, %c0_60] : memref<1x4x16x128xf32, #tpu.memory_space<vmem>>, vector<1x1x16x128xf32>
    %141 = vector.shape_cast %140 : vector<1x1x16x128xf32> to vector<16x128xf32>
    %142 = arith.mulf %141, %122 : vector<16x128xf32>
    %c0_61 = arith.constant 0 : index
    %143 = arith.index_cast %c2_i32_57 : i32 to index
    %c0_62 = arith.constant 0 : index
    %c0_63 = arith.constant 0 : index
    %144 = vector.load %arg3[%c0_61, %143, %c0_62, %c0_63] : memref<1x4x16x128xf32, #tpu.memory_space<vmem>>, vector<1x1x16x128xf32>
    %145 = vector.shape_cast %144 : vector<1x1x16x128xf32> to vector<16x128xf32>
    %146 = vector.shape_cast %142 : vector<16x128xf32> to vector<1x1x16x128xf32>
    tpu.vector_store %arg3[%c0_61, %143, %c0_62, %c0_63], %146 {strides = array<i32>} : memref<1x4x16x128xf32, #tpu.memory_space<vmem>>, vector<1x1x16x128xf32>,
    %c3_i32_64 = arith.constant 3 : i32
    %c0_65 = arith.constant 0 : index
    %147 = arith.index_cast %c3_i32_64 : i32 to index
    %c0_66 = arith.constant 0 : index
    %c0_67 = arith.constant 0 : index
    %148 = vector.load %arg2[%c0_65, %147, %c0_66, %c0_67] : memref<1x4x16x128xf32, #tpu.memory_space<vmem>>, vector<1x1x16x128xf32>
    %149 = vector.shape_cast %148 : vector<1x1x16x128xf32> to vector<16x128xf32>
    %150 = arith.mulf %149, %122 : vector<16x128xf32>
    %c0_68 = arith.constant 0 : index
    %151 = arith.index_cast %c3_i32_64 : i32 to index
    %c0_69 = arith.constant 0 : index
    %c0_70 = arith.constant 0 : index
    %152 = vector.load %arg3[%c0_68, %151, %c0_69, %c0_70] : memref<1x4x16x128xf32, #tpu.memory_space<vmem>>, vector<1x1x16x128xf32>
    %153 = vector.shape_cast %152 : vector<1x1x16x128xf32> to vector<16x128xf32>
    %154 = vector.shape_cast %150 : vector<16x128xf32> to vector<1x1x16x128xf32>
    tpu.vector_store %arg3[%c0_68, %151, %c0_69, %c0_70], %154 {strides = array<i32>} : memref<1x4x16x128xf32, #tpu.memory_space<vmem>>, vector<1x1x16x128xf32>,
    %c4_i32_71 = arith.constant 4 : i32
    return
  }
  func.func @transform_0(%arg0: i32) -> i32 {
    %c0_i32 = arith.constant 0 : i32
    %c0_i32_0 = arith.constant 0 : i32
    return %c0_i32 : i32
  }
  func.func @transform_1(%arg0: i32) -> (i32, i32, i32, i32) {
    %c0_i32 = arith.constant 0 : i32
    %c0_i32_0 = arith.constant 0 : i32
    %c0_i32_1 = arith.constant 0 : i32
    %c0_i32_2 = arith.constant 0 : i32
    return %arg0, %c0_i32, %c0_i32_0, %c0_i32_1 : i32, i32, i32, i32
  }
  func.func @transform_2(%arg0: i32) -> (i32, i32, i32, i32) {
    %c0_i32 = arith.constant 0 : i32
    %c0_i32_0 = arith.constant 0 : i32
    %c0_i32_1 = arith.constant 0 : i32
    %c0_i32_2 = arith.constant 0 : i32
    return %arg0, %c0_i32, %c0_i32_0, %c0_i32_1 : i32, i32, i32, i32
  }
}

</mosaic_0001>

<llo_original>
// kernel: tpu_custom_call.1
$region0: #{tpu_custom_call.1}
  #allocation0 [shape = 'u32[]', space=smem, size = 0x4, offset = 0x4, fixed_abs, tag = 'smem constant byte address 0x4 - core index']
  #allocation1 [shape = 'u32[144,128]{1,0:T(1,128)}', space=vmem, size = 0x12000, scoped, tag = 'internal scratch']
  %s0 = inlined_call_operand.hbm [shape: f32[20], index: 0, kind: input, shape index: {}]
  %s1 = inlined_call_operand.hbm [shape: f32[2,4,16,128], index: 1, kind: input, shape index: {}]
  %s2 = inlined_call_operand.hbm [shape: f32[2,4,16,128], index: 2, kind: output, shape index: {}]
  %s3 = sld [smem:[#allocation0]]
  $region49: #{tpu_custom_call.1} parent=0
    _
  %s5 = ssub.s32 1, %s3
  %s6 = scalar_select 0, %s5, %s3
  $region1: #{tpu_custom_call.1} parent=0
    #allocation2 [shape = 'u8[512]{0}', space=smem, size = 0x200, scoped, tag = 'input window, operand 0, single buffered']
    #allocation3 [shape = 's32[2]{0}', space=sflag, size = 0x8, scoped, tag = 'scoped memory for tpu_custom_call.1']
    #allocation4 [shape = 's32[2]{0}', space=sflag, size = 0x8, scoped, tag = 'scoped memory for tpu_custom_call.1']
    #allocation5 [shape = 's32[2]{0}', space=sflag, size = 0x8, scoped, tag = 'scoped memory for tpu_custom_call.1']
    #allocation6 [shape = 'u8[65536]{0}', space=vmem, size = 0x10000, scoped, tag = 'input window, operand 1']
    #allocation7 [shape = 'u8[65536]{0}', space=vmem, size = 0x10000, scoped, tag = 'output window, operand 0']
    %7 = vsyncpa [#allocation5], 0
    %8 = vsyncpa [#allocation3], 0
    %s9 = scalar_lea.sflag [#allocation3], 1
    %10 = vsyncpa %s9, 0
    %11 = vsyncpa [#allocation4], 0
    %s12 = scalar_lea.sflag [#allocation4], 1
    %13 = vsyncpa %s12, 0
    loop: start=0, step=1, limit=4
    $region2: #{tpu_custom_call.1} parent=1 // loop_pre_header
      _
    $region3: #{tpu_custom_call.1} parent=1 // loop_header
      %s15 = sphi 0, %s19
      %p16 = scmp.ge.s32.totalorder %s15, 4
      %s23 = sphi 0, %s23
      %s25 = sphi 0, %s23
      %s26 = sphi 0, %s25
      %s40 = sphi 0, %s26
      %s46 = sphi 0, %s48
      %s49 = sphi 0, %s46
      %s50 = sphi 0, %s49
      %s66 = sphi 0, %s50
      %s72 = sphi 0, %s74
      %s75 = sphi 0, %s72
      %s76 = sphi 0, %s75
      %s92 = sphi 0, %s76
    $region4: #{tpu_custom_call.1} parent=1 // loop_header_branch
      %18 = sbr.rel (%p16) target = $region8
    $region5: #{tpu_custom_call.1} parent=1 // loop_body
      %s20 = ssub.s32 %s15, 1
      %s21 = ssub.s32 %s15, 2
      %s22 = sadd.s32 %s15, 1
      %s24 = sadd.s32 %s23, 1
      %p27 = scmp.eq.s32.totalorder %s15, 1
      %p28 = scmp.ne.s32.totalorder %s23, %s25
      %p29 = scmp.eq.s32.totalorder %s15, 0
      %p30 = por %p28, %p29
      %p31 = scmp.ne.s32.totalorder %s23, %s25
      %p32 = scmp.eq.s32.totalorder %s20, 1
      %p33 = por %p31, %p32
      %p34 = scmp.ne.s32.totalorder %s25, %s26
      %p35 = scmp.eq.s32.totalorder %s20, 0
      %p36 = por %p34, %p35
      %p37 = scmp.ne.s32.totalorder %s25, %s26
      %p38 = scmp.eq.s32.totalorder %s21, 1
      %p39 = por %p37, %p38
      %p41 = scmp.ne.s32.totalorder %s26, %s40
      %p42 = scmp.eq.s32.totalorder %s21, 0
      %p43 = por %p41, %p42
      %s44 = ssub.s32 %s15, %s22
      %p45 = scmp.eq.s32.totalorder %s44, 0
      %s47 = sadd.s32 %s46, 1
      %s48 = scalar_select %p45, %s46, %s47
      %p51 = pneg %p45
      %p52 = scmp.eq.s32.totalorder %s15, 1
      %p53 = por %p51, %p52
      %p54 = scmp.ne.s32.totalorder %s46, %s49
      %p55 = scmp.eq.s32.totalorder %s15, 0
      %p56 = por %p54, %p55
      %p57 = scmp.ne.s32.totalorder %s46, %s49
      %p58 = scmp.eq.s32.totalorder %s20, 1
      %p59 = por %p57, %p58
      %p60 = scmp.ne.s32.totalorder %s49, %s50
      %p61 = scmp.eq.s32.totalorder %s20, 0
      %p62 = por %p60, %p61
      %p63 = scmp.ne.s32.totalorder %s49, %s50
      %p64 = scmp.eq.s32.totalorder %s21, 1
      %p65 = por %p63, %p64
      %p67 = scmp.ne.s32.totalorder %s50, %s66
      %p68 = scmp.eq.s32.totalorder %s21, 0
      %p69 = por %p67, %p68
      %s70 = ssub.s32 %s15, %s22
      %p71 = scmp.eq.s32.totalorder %s70, 0
      %s73 = sadd.s32 %s72, 1
      %s74 = scalar_select %p71, %s72, %s73
      %p77 = pneg %p71
      %p78 = scmp.eq.s32.totalorder %s15, 1
      %p79 = por %p77, %p78
      %p80 = scmp.ne.s32.totalorder %s72, %s75
      %p81 = scmp.eq.s32.totalorder %s15, 0
      %p82 = por %p80, %p81
      %p83 = scmp.ne.s32.totalorder %s72, %s75
      %p84 = scmp.eq.s32.totalorder %s20, 1
      %p85 = por %p83, %p84
      %p86 = scmp.ne.s32.totalorder %s75, %s76
      %p87 = scmp.eq.s32.totalorder %s20, 0
      %p88 = por %p86, %p87
      %p89 = scmp.ne.s32.totalorder %s75, %s76
      %p90 = scmp.eq.s32.totalorder %s21, 1
      %p91 = por %p89, %p90
      %p93 = scmp.ne.s32.totalorder %s76, %s92
      %p94 = scmp.eq.s32.totalorder %s21, 0
      %p95 = por %p93, %p94
      %p96 = scmp.le.s32.totalorder 1, %s15
      %p97 = scmp.lt.s32.totalorder %s15, 3
      %p98 = pnand %p96, %p97
      %p99 = pneg %p98
      // Predicated region
      $region9: #{tpu_custom_call.1} parent=5 // pred_check
        _
      $region10: #{tpu_custom_call.1} parent=5 // pred_check_branch
        %101 = sbr.rel (%p98) target = $region12
      $region11: #{tpu_custom_call.1} parent=5 // pred_region
        %s102 = ssub.s32 %s15, 1
        // Predicated region
        $region13: #{tpu_custom_call.1} parent=11 // pred_check
          %p103 = pneg %p36
        $region14: #{tpu_custom_call.1} parent=11 // pred_check_branch
          %105 = sbr.rel (%p103) target = $region16
        $region15: #{tpu_custom_call.1} parent=11 // pred_region
          %s107 = ssub.s32 16, 16
          %108 = vsyncadd [#allocation5], %s107
          %111 = dma.hbm_to_smem %s0, 16, [#allocation2], [#allocation5]
        $region16: #{tpu_custom_call.1} parent=11 // pred_fallthru
          _
      $region12: #{tpu_custom_call.1} parent=5 // pred_fallthru
        _
      %p112 = scmp.lt.s32.totalorder %s15, 2
      // Predicated region
      $region17: #{tpu_custom_call.1} parent=5 // pred_check
        %p113 = pneg %p112
      $region18: #{tpu_custom_call.1} parent=5 // pred_check_branch
        %115 = sbr.rel (%p113) target = $region20
      $region19: #{tpu_custom_call.1} parent=5 // pred_region
        // Predicated region
        $region21: #{tpu_custom_call.1} parent=19 // pred_check
          %p116 = pneg %p56
        $region22: #{tpu_custom_call.1} parent=19 // pred_check_branch
          %118 = sbr.rel (%p116) target = $region24
        $region23: #{tpu_custom_call.1} parent=19 // pred_region
          %s119 = sand.u32 %s46, 1
          %s120 = scalar_lea.sflag [#allocation3], %s119
          %s121 = sand.u32 %s46, 1
          %s122 = smul.addr %s121, 64
          %s123 = scalar_lea.vmem [#allocation6], %s122
          %s125 = ssub.s32 1024, 1024
          %126 = vsyncadd %s120, %s125
          %s127 = smul.addr %s15, 8
          %s128 = smul.addr %s127, 128
          %s129 = scalar_lea.hbm %s1, %s128
          %s130 = sshll.u32 %s123, 4
          %s131 = int_to_ptr.vmem [resolvable:$true] %s130
          %136 = dma.hbm_to_vmem [thread:$0]  %s129, 1024, %s131, %s120, 128, 128, 8
        $region24: #{tpu_custom_call.1} parent=19 // pred_fallthru
          _
      $region20: #{tpu_custom_call.1} parent=5 // pred_fallthru
        _
      %p137 = scmp.le.s32.totalorder 1, %s15
      %p138 = scmp.lt.s32.totalorder %s15, 3
      %p139 = pnand %p137, %p138
      %p140 = pneg %p139
      // Predicated region
      $region25: #{tpu_custom_call.1} parent=5 // pred_check
        _
      $region26: #{tpu_custom_call.1} parent=5 // pred_check_branch
        %142 = sbr.rel (%p139) target = $region28
      $region27: #{tpu_custom_call.1} parent=5 // pred_region
        %s143 = ssub.s32 %s15, 1
        // Predicated region
        $region29: #{tpu_custom_call.1} parent=27 // pred_check
          %p144 = pneg %p36
        $region30: #{tpu_custom_call.1} parent=27 // pred_check_branch
          %146 = sbr.rel (%p144) target = $region32
        $region31: #{tpu_custom_call.1} parent=27 // pred_region
          %147 = dma.done [#allocation5], 16
        $region32: #{tpu_custom_call.1} parent=27 // pred_fallthru
          _
        %s148 = sand.u32 %s49, 1
        %s149 = scalar_lea.sflag [#allocation3], %s148
        %s150 = sand.u32 %s49, 1
        %s151 = smul.addr %s150, 64
        %s152 = scalar_lea.vmem [#allocation6], %s151
        // Predicated region
        $region33: #{tpu_custom_call.1} parent=27 // pred_check
          %p153 = pneg %p62
        $region34: #{tpu_custom_call.1} parent=27 // pred_check_branch
          %155 = sbr.rel (%p153) target = $region36
        $region35: #{tpu_custom_call.1} parent=27 // pred_region
          %156 = dma.done %s149, 1024
        $region36: #{tpu_custom_call.1} parent=27 // pred_fallthru
          _
        %157 = sfence
        %p158 = pneg %p36
        %p159 = pneg %p33
        %s160 = sand.u32 %s49, 1
        %s161 = scalar_lea.sflag [#allocation3], %s160
        %s162 = sand.u32 %s49, 1
        %s163 = smul.addr %s162, 64
        %s164 = scalar_lea.vmem [#allocation6], %s163
        %p165 = pneg %p62
        %p166 = pneg %p59
        %p167 = pneg %p88
        %p168 = pneg %p85
        %s169 = sand.u32 %s75, 1
        %s170 = scalar_lea.sflag [#allocation4], %s169
        %s171 = sand.u32 %s75, 1
        %s172 = smul.addr %s171, 64
        %s173 = scalar_lea.vmem [#allocation7], %s172
        %v174 = vld [vmem:[%s152] sm:$0xff]
        %v175 = vld [vmem:[%s152 + $0x8] sm:$0xff]
        %s176 = scalar_lea.vmem %s152, 16 [#allocation6]
        %v177 = vld [vmem:[%s176] sm:$0xff]
        %v178 = vld [vmem:[%s176 + $0x8] sm:$0xff]
        %v179 = vadd.f32 %v174, %v177
        %v180 = vadd.f32 %v175, %v178
        %v181 = vmax.f32 %v174, %v177
        %v182 = vmax.f32 %v175, %v178
        %s183 = scalar_lea.vmem %s152, 32 [#allocation6]
        %v184 = vld [vmem:[%s183] sm:$0xff]
        %v185 = vld [vmem:[%s183 + $0x8] sm:$0xff]
        %v186 = vadd.f32 %v179, %v184
        %v187 = vadd.f32 %v180, %v185
        %v188 = vmax.f32 %v181, %v184
        %v189 = vmax.f32 %v182, %v185
        %s190 = scalar_lea.vmem %s152, 48 [#allocation6]
        %v191 = vld [vmem:[%s190] sm:$0xff]
        %v192 = vld [vmem:[%s190 + $0x8] sm:$0xff]
        %v193 = vadd.f32 %v186, %v191
        %v194 = vadd.f32 %v187, %v192
        %v195 = vmax.f32 %v188, %v191
        %v196 = vmax.f32 %v189, %v192
        %v197 = vlaneseq
        %v198 = vshrl.u32 %v197, 7
        %v199 = vadd.s32 %v198, 8
        %v200 = vlaneseq
        %v201 = vand.u32 %v200, 127
        %vm202 = vcmp.gt.s32.totalorder %v198, 0
        %vm203 = vcmp.gt.s32.totalorder %v199, 0
        %vm204 = vcmp.lt.s32.totalorder %v198, 15
        %vm205 = vcmp.lt.s32.totalorder %v199, 15
        %vm206 = vcmp.gt.s32.totalorder %v201, 0
        %vm207 = vcmp.lt.s32.totalorder %v201, 127
        %s208 = smul.u32 %s20, 10
        %s209 = sld [smem:[#allocation2 + %s208]]
        %v210 = vrot.slane %v193, 7
        %v211 = vrot.slane %v194, 7
        %vm212 = vcmp.lt.s32.totalorder %v198, 1
        %v213 = vsel %vm212, %v210, %v211
        %v214 = vsel %vm212, %v211, %v210
        %v215 = vsel %vm202, %v214, 0.0
        %v216 = vsel %vm203, %v213, 0.0
        %v217 = vstv %s209
        %v218 = vmul.f32 %v217, %v215
        %v219 = vmul.f32 %v217, %v216
        %v220 = vadd.f32 %v218, 0.0
        %v221 = vadd.f32 %v219, 0.0
        %s222 = sadd.s32 %s208, 1
        %s223 = sld [smem:[#allocation2 + %s222]]
        %v224 = vrot.slane %v193, 1
        %v225 = vrot.slane %v194, 1
        %vm226 = vcmp.lt.s32.totalorder %v198, 7
        %v227 = vsel %vm226, %v224, %v225
        %v228 = vsel %vm226, %v225, %v224
        %v229 = vsel %vm204, %v227, 0.0
        %v230 = vsel %vm205, %v228, 0.0
        %v231 = vstv %s223
        %v232 = vmul.f32 %v231, %v229
        %v233 = vmul.f32 %v231, %v230
        %v234 = vadd.f32 %v220, %v232
        %v235 = vadd.f32 %v221, %v233
        %s236 = sadd.s32 %s208, 2
        %s237 = sld [smem:[#allocation2 + %s236]]
        %238 = vrot.lane.b32.xlu0 %v193, 1
        %v239 = vpop.permute.xlu0 %238
        %240 = vrot.lane.b32.xlu0 %v194, 1
        %v241 = vpop.permute.xlu0 %240
        %v242 = vsel %vm206, %v239, 0.0
        %v243 = vsel %vm206, %v241, 0.0
        %v244 = vstv %s237
        %v245 = vmul.f32 %v244, %v242
        %v246 = vmul.f32 %v244, %v243
        %v247 = vadd.f32 %v234, %v245
        %v248 = vadd.f32 %v235, %v246
        %s249 = sadd.s32 %s208, 3
        %s250 = sld [smem:[#allocation2 + %s249]]
        %251 = vrot.lane.b32.xlu0 %v193, 127
        %v252 = vpop.permute.xlu0 %251
        %253 = vrot.lane.b32.xlu0 %v194, 127
        %v254 = vpop.permute.xlu0 %253
        %v255 = vsel %vm207, %v252, 0.0
        %v256 = vsel %vm207, %v254, 0.0
        %v257 = vstv %s250
        %v258 = vmul.f32 %v257, %v255
        %v259 = vmul.f32 %v257, %v256
        %v260 = vadd.f32 %v247, %v258
        %v261 = vadd.f32 %v248, %v259
        %s262 = sadd.s32 %s208, 4
        %s263 = sld [smem:[#allocation2 + %s262]]
        %v264 = vstv %s263
        %v265 = vmul.f32 %v264, %v193
        %v266 = vmul.f32 %v264, %v194
        %v267 = vadd.f32 %v260, %v265
        %v268 = vadd.f32 %v261, %v266
        %s269 = sadd.s32 %s208, 5
        %s270 = sld [smem:[#allocation2 + %s269]]
        %v271 = vrot.slane %v195, 7
        %v272 = vrot.slane %v196, 7
        %v273 = vsel %vm212, %v271, %v272
        %v274 = vsel %vm212, %v272, %v271
        %v275 = vsel %vm202, %v274, 0.0
        %v276 = vsel %vm203, %v273, 0.0
        %v277 = vstv %s270
        %v278 = vmul.f32 %v277, %v275
        %v279 = vmul.f32 %v277, %v276
        %v280 = vadd.f32 %v267, %v278
        %v281 = vadd.f32 %v268, %v279
        %s282 = sadd.s32 %s208, 6
        %s283 = sld [smem:[#allocation2 + %s282]]
        %v284 = vrot.slane %v195, 1
        %v285 = vrot.slane %v196, 1
        %v286 = vsel %vm226, %v284, %v285
        %v287 = vsel %vm226, %v285, %v284
        %v288 = vsel %vm204, %v286, 0.0
        %v289 = vsel %vm205, %v287, 0.0
        %v290 = vstv %s283
        %v291 = vmul.f32 %v290, %v288
        %v292 = vmul.f32 %v290, %v289
        %v293 = vadd.f32 %v280, %v291
        %v294 = vadd.f32 %v281, %v292
        %s295 = sadd.s32 %s208, 7
        %s296 = sld [smem:[#allocation2 + %s295]]
        %297 = vrot.lane.b32.xlu0 %v195, 1
        %v298 = vpop.permute.xlu0 %297
        %299 = vrot.lane.b32.xlu0 %v196, 1
        %v300 = vpop.permute.xlu0 %299
        %v301 = vsel %vm206, %v298, 0.0
        %v302 = vsel %vm206, %v300, 0.0
        %v303 = vstv %s296
        %v304 = vmul.f32 %v303, %v301
        %v305 = vmul.f32 %v303, %v302
        %v306 = vadd.f32 %v293, %v304
        %v307 = vadd.f32 %v294, %v305
        %s308 = sadd.s32 %s208, 8
        %s309 = sld [smem:[#allocation2 + %s308]]
        %310 = vrot.lane.b32.xlu0 %v195, 127
        %v311 = vpop.permute.xlu0 %310
        %312 = vrot.lane.b32.xlu0 %v196, 127
        %v313 = vpop.permute.xlu0 %312
        %v314 = vsel %vm207, %v311, 0.0
        %v315 = vsel %vm207, %v313, 0.0
        %v316 = vstv %s309
        %v317 = vmul.f32 %v316, %v314
        %v318 = vmul.f32 %v316, %v315
        %v319 = vadd.f32 %v306, %v317
        %v320 = vadd.f32 %v307, %v318
        %s321 = sadd.s32 %s208, 9
        %s322 = sld [smem:[#allocation2 + %s321]]
        %v323 = vstv %s322
        %v324 = vmul.f32 %v323, %v195
        %v325 = vmul.f32 %v323, %v196
        %v326 = vadd.f32 %v319, %v324
        %v327 = vadd.f32 %v320, %v325
        %v328 = vsub.f32 0.0, %v326
        %v329 = vsub.f32 0.0, %v327
        %v330 = vmul.f32 %v328, 1.442695
        %v331 = vpow.pop %v330
        %v332 = vmul.f32 %v329, 1.442695
        %v333 = vpow.pop %v332
        %v334 = vadd.f32 %v331, 1.0
        %v335 = vadd.f32 %v333, 1.0
        %v336 = vrcp.pop %v334
        %v337 = vrcp.pop %v335
        %v338 = vadd.f32 %v336, 1.0
        %v339 = vadd.f32 %v337, 1.0
        %v340 = vmul.f32 %v174, %v338
        %v341 = vmul.f32 %v175, %v339
        %342 = vst [vmem:[%s173] sm:$0xff] %v340
        %343 = vst [vmem:[%s173 + $0x8] sm:$0xff] %v341
        %v344 = vld [vmem:[%s176] sm:$0xff]
        %v345 = vld [vmem:[%s176 + $0x8] sm:$0xff]
        %v346 = vmul.f32 %v344, %v338
        %v347 = vmul.f32 %v345, %v339
        %s348 = scalar_lea.vmem %s173, 16 [#allocation7]
        %349 = vst [vmem:[%s348] sm:$0xff] %v346
        %350 = vst [vmem:[%s348 + $0x8] sm:$0xff] %v347
        %v351 = vld [vmem:[%s183] sm:$0xff]
        %v352 = vld [vmem:[%s183 + $0x8] sm:$0xff]
        %v353 = vmul.f32 %v351, %v338
        %v354 = vmul.f32 %v352, %v339
        %s355 = scalar_lea.vmem %s173, 32 [#allocation7]
        %356 = vst [vmem:[%s355] sm:$0xff] %v353
        %357 = vst [vmem:[%s355 + $0x8] sm:$0xff] %v354
        %v358 = vld [vmem:[%s190] sm:$0xff]
        %v359 = vld [vmem:[%s190 + $0x8] sm:$0xff]
        %v360 = vmul.f32 %v358, %v338
        %v361 = vmul.f32 %v359, %v339
        %s362 = scalar_lea.vmem %s173, 48 [#allocation7]
        %363 = vst [vmem:[%s362] sm:$0xff] %v360
        %364 = vst [vmem:[%s362 + $0x8] sm:$0xff] %v361
        %s365 = sand.u32 %s75, 1
        %s366 = scalar_lea.sflag [#allocation4], %s365
        %s367 = sand.u32 %s75, 1
        %s368 = smul.addr %s367, 64
        %s369 = scalar_lea.vmem [#allocation7], %s368
        // Predicated region
        $region37: #{tpu_custom_call.1} parent=27 // pred_check
          %p370 = pneg %p85
        $region38: #{tpu_custom_call.1} parent=27 // pred_check_branch
          %372 = sbr.rel (%p370) target = $region40
        $region39: #{tpu_custom_call.1} parent=27 // pred_region
          %s374 = ssub.s32 1024, 1024
          %375 = vsyncadd %s366, %s374
          %s376 = smul.addr %s20, 8
          %s377 = smul.addr %s376, 128
          %s378 = scalar_lea.hbm %s2, %s377
          %s379 = sshll.u32 %s369, 4
          %s380 = int_to_ptr.vmem [resolvable:$true] %s379
          %385 = dma.vmem_to_hbm [thread:$0]  %s380, 1024, %s378, %s366, 128, 128, 8
        $region40: #{tpu_custom_call.1} parent=27 // pred_fallthru
          _
      $region28: #{tpu_custom_call.1} parent=5 // pred_fallthru
        _
      %p386 = scmp.le.s32.totalorder 2, %s15
      // Predicated region
      $region41: #{tpu_custom_call.1} parent=5 // pred_check
        %p387 = pneg %p386
      $region42: #{tpu_custom_call.1} parent=5 // pred_check_branch
        %389 = sbr.rel (%p387) target = $region44
      $region43: #{tpu_custom_call.1} parent=5 // pred_region
        %s390 = ssub.s32 %s15, 2
        // Predicated region
        $region45: #{tpu_custom_call.1} parent=43 // pred_check
          %p391 = pneg %p91
        $region46: #{tpu_custom_call.1} parent=43 // pred_check_branch
          %393 = sbr.rel (%p391) target = $region48
        $region47: #{tpu_custom_call.1} parent=43 // pred_region
          %s394 = sand.u32 %s76, 1
          %s395 = scalar_lea.sflag [#allocation4], %s394
          %s396 = sand.u32 %s76, 1
          %s397 = smul.addr %s396, 64
          %s398 = scalar_lea.vmem [#allocation7], %s397
          %399 = dma.done %s395, 1024
        $region48: #{tpu_custom_call.1} parent=43 // pred_fallthru
          _
      $region44: #{tpu_custom_call.1} parent=5 // pred_fallthru
        _
    $region6: #{tpu_custom_call.1} parent=1 // loop_footer
      %s19 = sadd.s32 1, %s15
    $region7: #{tpu_custom_call.1} parent=1 // loop_footer_branch
      %14 = sbr.rel target = $region3
    $region8: #{tpu_custom_call.1} parent=1 // loop_exit
      _
    %400 = vsyncpa [#allocation3], 1
    %s401 = scalar_lea.sflag [#allocation3], 1
    %402 = vsyncpa %s401, 1
    %403 = vsyncpa [#allocation4], 1
    %s404 = scalar_lea.sflag [#allocation4], 1
    %405 = vsyncpa %s404, 1
    %406 = vsyncpa [#allocation5], 1
    %s407 = scalar_lea.sflag [#allocation5], 1
    %408 = vsyncpa %s407, 1

</llo_original>
